<compile_context>
chip_gen: v6e
topology: v6e:2x2x1
jax: 0.10.0
libtpu: 0.0.40
codegen_flags: <defaults>
</compile_context>

<pallas_src>
from functools import partial

import jax
import jax.numpy as jnp
from jax.experimental import pallas as pl
from jax.experimental.pallas import tpu as pltpu

_LANE = 128
_SUBLANE = 8


def _cdiv(a, b):
    return -(-a // b)


def _round_up(x, m):
    return _cdiv(x, m) * m


def _vmem_budget():
    """(vmem_limit_bytes, tile_budget_bytes) from the physical VMEM size."""
    phys = None
    try:
        info = pltpu.get_tpu_info()
        phys = int(getattr(info, "vmem_capacity_bytes"))
    except Exception:
        phys = None
    if not phys:
        kind = ""
        try:
            kind = jax.devices()[0].device_kind.lower()
        except Exception:
            pass
        if "v5" in kind or "v6" in kind:
            phys = 128 << 20
        else:
            phys = 64 << 20            # conservative: assume v7x-sized VMEM
    vmem_limit = min(int(phys * 0.70), 96 << 20)
    tile_budget = max(vmem_limit - (4 << 20), 8 << 20)   # Mosaic scratch headroom
    return vmem_limit, tile_budget


def _pick_tile_k(in_f, budget, out_fp, w_bytes):
    """Largest multiple of 128 dividing in_f whose double-buffered weight
    block stays well inside the VMEM budget (None if no clean split)."""
    divisors = [tk for tk in range(_LANE, in_f + 1, _LANE) if in_f % tk == 0]
    if not divisors:
        return None
    fitting = [tk for tk in divisors if 2 * tk * out_fp * w_bytes <= budget // 2]
    return max(fitting) if fitting else min(divisors)


# ----------------------------- kernels --------------------------------------

def _lorentz_epilogue(y, scale_val, k):
    """y: (TM, out_fp) f32, column 0 is the time component."""
    y_time = y[:, 0:1]                                     # lane slice, no XLU
    time = jax.nn.sigmoid(y_time) * jnp.exp(scale_val) + 1.1
    # ||space||^2 = sum(y^2) - y_time^2, clamped at 0 (cancellation guard).
    space_sq = jnp.sum(y * y, axis=-1, keepdims=True) - y_time * y_time
    denom = jnp.maximum(space_sq, 0.0) + 1e-9
    coef = jnp.sqrt((time * time - k) / denom)             # (TM,1) work only
    col = jax.lax.broadcasted_iota(jnp.int32, y.shape, 1)
    return jnp.where(col == 0, time, y * coef)


def _lorentz_kernel_resident(scale_ref, x_ref, wt_ref, b_ref, o_ref, *,
                             k, compute_dtype):
    # x_ref: (TM, in_f) native dtype; wt_ref: (in_f, out_fp) compute dtype
    # (resident); b_ref: (1, out_fp) f32; scale_ref: (1,) f32 in SMEM.
    x = x_ref[...].astype(compute_dtype)
    y = jnp.dot(x, wt_ref[...], preferred_element_type=jnp.float32) + b_ref[...]
    o_ref[...] = _lorentz_epilogue(y, scale_ref[0], k).astype(o_ref.dtype)


def _lorentz_kernel_ktiled(scale_ref, x_ref, wt_ref, b_ref, o_ref, acc_ref, *,
                           k, compute_dtype):
    # Grid = (row_tiles, k_tiles); W^T streams in (tile_k, out_fp) blocks.
    kk = pl.program_id(1)

    @pl.when(kk == 0)
    def _():
        acc_ref[...] = jnp.zeros_like(acc_ref)

    x = x_ref[...].astype(compute_dtype)
    acc_ref[...] += jnp.dot(x, wt_ref[...], preferred_element_type=jnp.float32)

    @pl.when(kk == pl.num_programs(1) - 1)
    def _():
        y = acc_ref[...] + b_ref[...]
        o_ref[...] = _lorentz_epilogue(y, scale_ref[0], k).astype(o_ref.dtype)


# ----------------------------- wrappers --------------------------------------

def prepare_lorentz_params(weight, bias, *, compute_dtype=jnp.bfloat16):
    """One-time parameter prep (hoisted out of the per-call path): transpose +
    cast W, pad out_features to a lane multiple with zero weight/bias columns
    (the zeros cannot perturb the Lorentz normalization)."""
    out_f, in_f = weight.shape
    out_fp = _round_up(out_f, _LANE)
    wt = weight.T.astype(compute_dtype)                    # [in_f, out_f]
    b2 = bias.reshape(1, out_f).astype(jnp.float32)
    if out_fp != out_f:
        wt = jnp.pad(wt, ((0, 0), (0, out_fp - out_f)))
        b2 = jnp.pad(b2, ((0, 0), (0, out_fp - out_f)))
    return wt, b2, out_f


def lorentz_linear_prepared(x, wt, b2, scale, out_f, *, k=1.0, out_dtype=None,
                            tile_m=None, tile_k=None):
    """x: [..., in_f]; wt: [in_f, out_fp] (prepared); b2: [1, out_fp] f32."""
    in_f, out_fp = wt.shape
    assert x.shape[-1] == in_f
    lead = x.shape[:-1]

    xf = x.reshape(-1, in_f)               # native dtype: no extra HBM pass
    n = xf.shape[0]

    compute_dtype = wt.dtype
    out_dtype = compute_dtype if out_dtype is None else out_dtype
    x_bytes = xf.dtype.itemsize
    w_bytes = jnp.dtype(compute_dtype).itemsize
    o_bytes = jnp.dtype(out_dtype).itemsize

    vmem_limit, budget = _vmem_budget()
    s1 = jnp.reshape(scale, (1,)).astype(jnp.float32)

    # ---- resident-weight accounting (double buffers + f32 epilogue temps) ---
    wt_resident = 2 * in_f * out_fp * w_bytes     # resident specs still get 2 bufs
    bias_bytes = 2 * out_fp * 4
    per_row_res = 2 * in_f * x_bytes + 2 * out_fp * o_bytes + 3 * out_fp * 4
    fit_res = (budget - wt_resident - bias_bytes) // per_row_res

    # Keep >= ~8 grid steps along rows (2 TCs on v7x + DMA pipelining).
    row_cap = max(_SUBLANE, _round_up(_cdiv(n, 8), _SUBLANE))

    use_ktiled = tile_k is not None and 0 < int(tile_k) < in_f
    if fit_res < _SUBLANE:
        use_ktiled = True
    if use_ktiled:
        if (tile_k is None or in_f % int(tile_k) != 0
                or int(tile_k) % _LANE != 0 or int(tile_k) >= in_f):
            tile_k = _pick_tile_k(in_f, budget, out_fp, w_bytes)
        if tile_k is None:
            use_ktiled = False                    # no clean K split; may spill
            fit_res = max(int(fit_res), _SUBLANE)
        else:
            tile_k = int(tile_k)

    if not use_ktiled:
        if tile_m is None:
            tile_m = min(1024, int(fit_res), row_cap)
        tile_m = max(_SUBLANE, (int(tile_m) // _SUBLANE) * _SUBLANE)
        grid = (_cdiv(n, tile_m),)
        out = pl.pallas_call(
            partial(_lorentz_kernel_resident, k=float(k),
                    compute_dtype=compute_dtype),
            out_shape=jax.ShapeDtypeStruct((n, out_fp), out_dtype),
            grid=grid,
            in_specs=[
                pl.BlockSpec(memory_space=pltpu.MemorySpace.SMEM),   # scale
                pl.BlockSpec((tile_m, in_f), lambda i: (i, 0)),      # x tile
                pl.BlockSpec((in_f, out_fp), lambda i: (0, 0)),      # W^T resident
                pl.BlockSpec((1, out_fp), lambda i: (0, 0)),         # bias resident
            ],
            out_specs=pl.BlockSpec((tile_m, out_fp), lambda i: (i, 0)),
            compiler_params=pltpu.CompilerParams(
                dimension_semantics=("parallel",),
                vmem_limit_bytes=int(vmem_limit)),
        )(s1, xf, wt, b2)
    else:
        wt_stream = 2 * tile_k * out_fp * w_bytes
        per_row_kt = (2 * tile_k * x_bytes + 2 * out_fp * o_bytes
                      + out_fp * 4            # f32 accumulator scratch
                      + 3 * out_fp * 4)       # f32 epilogue intermediates
        fit_kt = (budget - wt_stream - bias_bytes) // per_row_kt
        if tile_m is None:
            tile_m = min(1024, max(int(fit_kt), _SUBLANE), row_cap)
        tile_m = max(_SUBLANE, (int(tile_m) // _SUBLANE) * _SUBLANE)
        grid = (_cdiv(n, tile_m), in_f // tile_k)
        out = pl.pallas_call(
            partial(_lorentz_kernel_ktiled, k=float(k),
                    compute_dtype=compute_dtype),
            out_shape=jax.ShapeDtypeStruct((n, out_fp), out_dtype),
            grid=grid,
            in_specs=[
                pl.BlockSpec(memory_space=pltpu.MemorySpace.SMEM),        # scale
                pl.BlockSpec((tile_m, tile_k), lambda i, kk: (i, kk)),    # x tile
                pl.BlockSpec((tile_k, out_fp), lambda i, kk: (kk, 0)),    # W^T block
                pl.BlockSpec((1, out_fp), lambda i, kk: (0, 0)),          # bias
            ],
            out_specs=pl.BlockSpec((tile_m, out_fp), lambda i, kk: (i, 0)),
            scratch_shapes=[pltpu.VMEM((tile_m, out_fp), jnp.float32)],
            compiler_params=pltpu.CompilerParams(
                dimension_semantics=("parallel", "arbitrary"),
                vmem_limit_bytes=int(vmem_limit)),
        )(s1, xf, wt, b2)

    if out_fp != out_f:
        out = out[:, :out_f]
    return out.reshape(*lead, out_f)


def lorentz_linear(x, weight, bias, scale, *, k=1.0,
                   compute_dtype=jnp.bfloat16, out_dtype=None,
                   tile_m=None, tile_k=None):
    """Convenience wrapper (prefer prepare_lorentz_params() once + the
    *_prepared call in real use so the W^T cast/pad is not paid per call)."""
    wt, b2, out_f = prepare_lorentz_params(weight, bias,
                                           compute_dtype=compute_dtype)
    return lorentz_linear_prepared(x, wt, b2, scale, out_f, k=k,
                                   out_dtype=out_dtype,
                                   tile_m=tile_m, tile_k=tile_k)


# ----------------------------- reference & demo ------------------------------

def _reference(x, weight, bias, scale, k=1.0, compute_dtype=jnp.float32):
    """Pure-JAX reference; compute_dtype mirrors the kernel streaming dtype."""
    xf = x.reshape(-1, x.shape[-1]).astype(compute_dtype)
    y = jnp.dot(xf, weight.T.astype(compute_dtype),
                preferred_element_type=jnp.float32)
    y = y.reshape(*x.shape[:-1], weight.shape[0]) + bias.astype(jnp.float32)
    time = jax.nn.sigmoid(y[..., 0:1]) * jnp.exp(scale) + 1.1
    narrow = y[..., 1:]
    sc = (time * time - k) / (jnp.sum(narrow * narrow, axis=-1, keepdims=True) + 1e-9)
    return jnp.concatenate([time, narrow * jnp.sqrt(sc)], axis=-1)


def _make_params(key, in_features, out_features):
    # Mirrors reset_parameters(): uniform(-0.02, 0.02), input column 0 zeroed
    # (head_num=0 -> step=in_features), bias=0, scale=2.3.
    weight = jax.random.uniform(key, (out_features, in_features),
                                minval=-0.02, maxval=0.02, dtype=jnp.float32)
    weight = weight.at[:, 0].set(0.0)
    bias = jnp.zeros((out_features,), dtype=jnp.float32)
    scale = jnp.asarray(2.3, dtype=jnp.float32)
    return weight, bias, scale


if __name__ == "__main__":
    key = jax.random.PRNGKey(0)
    k = 1.0  # Lorentz() curvature constant
    kx1, kw1, kx2, kw2, kx3, kw3 = jax.random.split(key, 6)

    # --- Tests 1 & 2: canonical small shape, resident-weight path -------------
    batch, seq, in_f, out_f = 2, 8, 32, 32
    x1 = jax.random.normal(kx1, (batch, seq, in_f), dtype=jnp.float32)
    w1, b1, s1 = _make_params(kw1, in_f, out_f)

    # f32 streaming + f32 output (escape hatch) vs pure f32 reference.
    wt_f32, bias_f32, of = prepare_lorentz_params(w1, b1, compute_dtype=jnp.float32)
    out_f32 = jax.block_until_ready(
        lorentz_linear_prepared(x1, wt_f32, bias_f32, s1, of, k=k))
    ref_f32 = _reference(x1, w1, b1, s1, k=k)
    assert out_f32.shape == (batch, seq, out_f)
    assert out_f32.dtype == jnp.float32
    assert jnp.allclose(out_f32, ref_f32, atol=1e-5, rtol=1e-4), "f32 path mismatch"

    # Default path: bf16 streaming + bf16 output vs bf16-matmul reference.
    wt_bf, bias_bf, of = prepare_lorentz_params(w1, b1)            # bf16 default
    out_bf = jax.block_until_ready(
        lorentz_linear_prepared(x1, wt_bf, bias_bf, s1, of, k=k))
    assert out_bf.dtype == jnp.bfloat16
    ref_bf = _reference(x1, w1, b1, s1, k=k, compute_dtype=jnp.bfloat16)
    assert jnp.allclose(out_bf.astype(jnp.float32), ref_bf,
                        atol=3e-2, rtol=2e-2), "bf16 path mismatch"

    # --- Test 3: ragged rows (no wrapper pad) + lane-padded output features ---
    x2 = jax.random.normal(kx2, (3, 5, in_f), dtype=jnp.float32)
    w2, b2, s2 = _make_params(kw2, in_f, 48)
    out2 = jax.block_until_ready(
        lorentz_linear(x2, w2, b2, s2, k=k, compute_dtype=jnp.float32))
    ref2 = _reference(x2, w2, b2, s2, k=k)
    assert out2.shape == (3, 5, 48)
    assert jnp.allclose(out2, ref2, atol=1e-5, rtol=1e-4), "padded/ragged mismatch"

    # --- Test 4: forced K-tiled weight streaming (accumulator + epilogue) -----
    x3 = jax.random.normal(kx3, (4, 16, 256), dtype=jnp.float32)
    w3, b3, s3 = _make_params(kw3, 256, 64)
    out3 = jax.block_until_ready(
        lorentz_linear(x3, w3, b3, s3, k=k, compute_dtype=jnp.float32, tile_k=128))
    ref3 = _reference(x3, w3, b3, s3, k=k)
    assert out3.shape == (4, 16, 64)
    assert jnp.allclose(out3, ref3, atol=1e-5, rtol=1e-4), "K-tiled mismatch"

    print("KERNEL_OK")
</pallas_src>

<mosaic_0001>
module attributes {stable_mosaic.version = 11 : i64} {
  func.func @_lorentz_kernel_resident(%arg0: i32, %arg1: memref<1xf32, #tpu.memory_space<smem>>, %arg2: memref<8x32xf32, #tpu.memory_space<vmem>>, %arg3: memref<32x128xf32, #tpu.memory_space<vmem>>, %arg4: memref<1x128xf32, #tpu.memory_space<vmem>>, %arg5: memref<8x128xf32, #tpu.memory_space<vmem>>) attributes {dimension_semantics = [#tpu.dimension_semantics<parallel>], iteration_bounds = array<i64: 2>, scalar_prefetch = 0 : i64, scratch_operands = 0 : i64, tpu.core_type = #tpu.core_type<tc>, window_params = [{transform_indices = @transform_0, window_bounds = array<i64: 1>}, {transform_indices = @transform_1, window_bounds = array<i64: 8, 32>}, {pipeline_mode = #tpu.pipeline_mode<synchronous>, transform_indices = @transform_2, window_bounds = array<i64: 32, 128>}, {pipeline_mode = #tpu.pipeline_mode<synchronous>, transform_indices = @transform_3, window_bounds = array<i64: 1, 128>}, {transform_indices = @transform_4, window_bounds = array<i64: 8, 128>}]} {
    %c0 = arith.constant 0 : index
    %c0_0 = arith.constant 0 : index
    %0 = vector.load %arg2[%c0, %c0_0] : memref<8x32xf32, #tpu.memory_space<vmem>>, vector<8x32xf32>
    %c0_1 = arith.constant 0 : index
    %c0_2 = arith.constant 0 : index
    %1 = vector.load %arg3[%c0_1, %c0_2] : memref<32x128xf32, #tpu.memory_space<vmem>>, vector<32x128xf32>
    %cst = arith.constant dense<0.000000e+00> : vector<8x128xf32>
    %2 = tpu.matmul %0, %1, %cst {dimension_numbers = #tpu.dot_dimension_numbers<[1], [0], [0], [1], [0, 0, 1, 1], [], []>} : vector<8x32xf32>, vector<32x128xf32>, vector<8x128xf32> -> vector<8x128xf32>
    %c0_3 = arith.constant 0 : index
    %c0_4 = arith.constant 0 : index
    %3 = vector.load %arg4[%c0_3, %c0_4] : memref<1x128xf32, #tpu.memory_space<vmem>>, vector<1x128xf32>
    %4 = vector.broadcast %3 : vector<1x128xf32> to vector<8x128xf32>
    %5 = arith.addf %2, %4 : vector<8x128xf32>
    %c0_5 = arith.constant 0 : index
    %6 = memref.load %arg1[%c0_5] : memref<1xf32, #tpu.memory_space<smem>>
    %7 = vector.extract_strided_slice %5 {offsets = [0, 0], sizes = [8, 1], strides = [1, 1]} : vector<8x128xf32> to vector<8x1xf32>
    %8 = arith.negf %7 : vector<8x1xf32>
    %9 = math.exp %8 : vector<8x1xf32>
    %cst_6 = arith.constant 1.000000e+00 : f32
    %10 = vector.broadcast %cst_6 : f32 to vector<8x1xf32>
    %11 = arith.addf %10, %9 : vector<8x1xf32>
    %12 = arith.divf %10, %11 : vector<8x1xf32>
    %13 = math.exp %6 : f32
    %14 = vector.broadcast %13 : f32 to vector<8x1xf32>
    %15 = arith.mulf %12, %14 : vector<8x1xf32>
    %cst_7 = arith.constant 1.100000e+00 : f32
    %16 = vector.broadcast %cst_7 : f32 to vector<8x1xf32>
    %17 = arith.addf %15, %16 : vector<8x1xf32>
    %18 = arith.mulf %5, %5 : vector<8x128xf32>
    %cst_8 = arith.constant dense<0.000000e+00> : vector<8xf32>
    %19 = vector.multi_reduction <add>, %18, %cst_8 [1] : vector<8x128xf32> to vector<8xf32>
    %20 = vector.shape_cast %19 : vector<8xf32> to vector<8x1xf32>
    %21 = arith.mulf %7, %7 : vector<8x1xf32>
    %22 = arith.subf %20, %21 : vector<8x1xf32>
    %cst_9 = arith.constant 0.000000e+00 : f32
    %23 = vector.broadcast %cst_9 : f32 to vector<8x1xf32>
    %24 = arith.maximumf %22, %23 : vector<8x1xf32>
    %cst_10 = arith.constant 9.99999971E-10 : f32
    %25 = vector.broadcast %cst_10 : f32 to vector<8x1xf32>
    %26 = arith.addf %24, %25 : vector<8x1xf32>
    %27 = arith.mulf %17, %17 : vector<8x1xf32>
    %cst_11 = arith.constant 1.000000e+00 : f32
    %28 = vector.broadcast %cst_11 : f32 to vector<8x1xf32>
    %29 = arith.subf %27, %28 : vector<8x1xf32>
    %30 = arith.divf %29, %26 : vector<8x1xf32>
    %31 = math.sqrt %30 : vector<8x1xf32>
    %32 = tpu.iota {dimensions = array<i32: 1>} : vector<8x128xi32>
    %c0_i32 = arith.constant 0 : i32
    %33 = vector.broadcast %c0_i32 : i32 to vector<8x128xi32>
    %34 = arith.cmpi eq, %32, %33 : vector<8x128xi32>
    %35 = vector.broadcast %31 : vector<8x1xf32> to vector<8x128xf32>
    %36 = arith.mulf %5, %35 : vector<8x128xf32>
    %37 = vector.shape_cast %17 : vector<8x1xf32> to vector<8x1xf32>
    %38 = vector.broadcast %37 : vector<8x1xf32> to vector<8x128xf32>
    %39 = arith.select %34, %38, %36 : vector<8x128xi1>, vector<8x128xf32>
    %c0_12 = arith.constant 0 : index
    %c0_13 = arith.constant 0 : index
    %40 = vector.load %arg5[%c0_12, %c0_13] : memref<8x128xf32, #tpu.memory_space<vmem>>, vector<8x128xf32>
    tpu.vector_store %arg5[%c0_12, %c0_13], %39 {strides = array<i32>} : memref<8x128xf32, #tpu.memory_space<vmem>>, vector<8x128xf32>,
    return
  }
  func.func @transform_0(%arg0: i32) -> i32 {
    %c0_i32 = arith.constant 0 : i32
    %c0_i32_0 = arith.constant 0 : i32
    return %c0_i32 : i32
  }
  func.func @transform_1(%arg0: i32) -> (i32, i32) {
    %c0_i32 = arith.constant 0 : i32
    %c0_i32_0 = arith.constant 0 : i32
    return %arg0, %c0_i32 : i32, i32
  }
  func.func @transform_2(%arg0: i32) -> (i32, i32) {
    %c0_i32 = arith.constant 0 : i32
    %c0_i32_0 = arith.constant 0 : i32
    %c0_i32_1 = arith.constant 0 : i32
    return %c0_i32, %c0_i32_0 : i32, i32
  }
  func.func @transform_3(%arg0: i32) -> (i32, i32) {
    %c0_i32 = arith.constant 0 : i32
    %c0_i32_0 = arith.constant 0 : i32
    %c0_i32_1 = arith.constant 0 : i32
    return %c0_i32, %c0_i32_0 : i32, i32
  }
  func.func @transform_4(%arg0: i32) -> (i32, i32) {
    %c0_i32 = arith.constant 0 : i32
    %c0_i32_0 = arith.constant 0 : i32
    return %arg0, %c0_i32 : i32, i32
  }
}

</mosaic_0001>

<llo_original>
// kernel: tpu_custom_call.1
$region0: #{tpu_custom_call.1}
  #allocation0 [shape = 'u32[]', space=smem, size = 0x4, offset = 0x4, fixed_abs, tag = 'smem constant byte address 0x4 - core index']
  #allocation1 [shape = 'u32[144,128]{1,0:T(1,128)}', space=vmem, size = 0x12000, scoped, tag = 'internal scratch']
  #allocation2 [shape = 'f32[1]{0:T(128)S(6)}', space=smem, size = 0x200, scoped, tag = 'scoped memory for tpu_custom_call.1']
  %s0 = inlined_call_operand.<no memory space> [shape: f32[1], index: 0, kind: input, shape index: {}]
  %s1 = inlined_call_operand.hbm [shape: f32[16,32], index: 1, kind: input, shape index: {}]
  %s2 = inlined_call_operand.hbm [shape: f32[32,128], index: 2, kind: input, shape index: {}]
  %s3 = inlined_call_operand.vmem [shape: f32[1,128], index: 3, kind: input, shape index: {}]
  %s4 = inlined_call_operand.hbm [shape: f32[16,128], index: 4, kind: output, shape index: {}]
  %s5 = sld [smem:[#allocation0]]
  $region57: #{tpu_custom_call.1} parent=0
    _
  %s7 = ssub.s32 1, %s5
  %s8 = scalar_select 0, %s7, %s5
  %9 = sst [smem:[#allocation2]] %s0
  $region1: #{tpu_custom_call.1} parent=0
    #allocation3 [shape = 'u8[8192]{0}', space=vmem, size = 0x2000, scoped, tag = 'input window, operand 1']
    #allocation4 [shape = 's32[2]{0}', space=sflag, size = 0x8, scoped, tag = 'scoped memory for tpu_custom_call.1']
    #allocation5 [shape = 's32[2]{0}', space=sflag, size = 0x8, scoped, tag = 'scoped memory for tpu_custom_call.1']
    #allocation6 [shape = 'u8[16384]{0}', space=vmem, size = 0x4000, scoped, tag = 'input window, operand 2, single buffered']
    #allocation7 [shape = 's32[1]{0}', space=sflag, size = 0x4, scoped, tag = 'scoped memory for tpu_custom_call.1']
    #allocation8 [shape = 'u8[8192]{0}', space=vmem, size = 0x2000, scoped, tag = 'output window, operand 0']
    %10 = vsyncpa [#allocation4], 0
    %s11 = scalar_lea.sflag [#allocation4], 1
    %12 = vsyncpa %s11, 0
    %13 = vsyncpa [#allocation7], 0
    %14 = vsyncpa [#allocation5], 0
    %s15 = scalar_lea.sflag [#allocation5], 1
    %16 = vsyncpa %s15, 0
    loop: start=0, step=1, limit=4
    $region2: #{tpu_custom_call.1} parent=1 // loop_pre_header
      _
    $region3: #{tpu_custom_call.1} parent=1 // loop_header
      %s18 = sphi 0, %s22
      %p19 = scmp.ge.s32.totalorder %s18, 4
      %s26 = sphi 0, %s26
      %s28 = sphi 0, %s26
      %s29 = sphi 0, %s28
      %s43 = sphi 0, %s29
      %s49 = sphi 0, %s51
      %s52 = sphi 0, %s49
      %s53 = sphi 0, %s52
      %s69 = sphi 0, %s53
      %s73 = sphi 0, %s73
      %s75 = sphi 0, %s73
      %s76 = sphi 0, %s75
      %s90 = sphi 0, %s76
      %s94 = sphi 0, %s94
      %s96 = sphi 0, %s94
      %s97 = sphi 0, %s96
      %s111 = sphi 0, %s97
      %s117 = sphi 0, %s119
      %s120 = sphi 0, %s117
      %s121 = sphi 0, %s120
      %s137 = sphi 0, %s121
    $region4: #{tpu_custom_call.1} parent=1 // loop_header_branch
      %21 = sbr.rel (%p19) target = $region8
    $region5: #{tpu_custom_call.1} parent=1 // loop_body
      %s23 = ssub.s32 %s18, 1
      %s24 = ssub.s32 %s18, 2
      %s25 = sadd.s32 %s18, 1
      %s27 = sadd.s32 %s26, 1
      %p30 = scmp.eq.s32.totalorder %s18, 1
      %p31 = scmp.ne.s32.totalorder %s26, %s28
      %p32 = scmp.eq.s32.totalorder %s18, 0
      %p33 = por %p31, %p32
      %p34 = scmp.ne.s32.totalorder %s26, %s28
      %p35 = scmp.eq.s32.totalorder %s23, 1
      %p36 = por %p34, %p35
      %p37 = scmp.ne.s32.totalorder %s28, %s29
      %p38 = scmp.eq.s32.totalorder %s23, 0
      %p39 = por %p37, %p38
      %p40 = scmp.ne.s32.totalorder %s28, %s29
      %p41 = scmp.eq.s32.totalorder %s24, 1
      %p42 = por %p40, %p41
      %p44 = scmp.ne.s32.totalorder %s29, %s43
      %p45 = scmp.eq.s32.totalorder %s24, 0
      %p46 = por %p44, %p45
      %s47 = ssub.s32 %s18, %s25
      %p48 = scmp.eq.s32.totalorder %s47, 0
      %s50 = sadd.s32 %s49, 1
      %s51 = scalar_select %p48, %s49, %s50
      %p54 = pneg %p48
      %p55 = scmp.eq.s32.totalorder %s18, 1
      %p56 = por %p54, %p55
      %p57 = scmp.ne.s32.totalorder %s49, %s52
      %p58 = scmp.eq.s32.totalorder %s18, 0
      %p59 = por %p57, %p58
      %p60 = scmp.ne.s32.totalorder %s49, %s52
      %p61 = scmp.eq.s32.totalorder %s23, 1
      %p62 = por %p60, %p61
      %p63 = scmp.ne.s32.totalorder %s52, %s53
      %p64 = scmp.eq.s32.totalorder %s23, 0
      %p65 = por %p63, %p64
      %p66 = scmp.ne.s32.totalorder %s52, %s53
      %p67 = scmp.eq.s32.totalorder %s24, 1
      %p68 = por %p66, %p67
      %p70 = scmp.ne.s32.totalorder %s53, %s69
      %p71 = scmp.eq.s32.totalorder %s24, 0
      %p72 = por %p70, %p71
      %s74 = sadd.s32 %s73, 1
      %p77 = scmp.eq.s32.totalorder %s18, 1
      %p78 = scmp.ne.s32.totalorder %s73, %s75
      %p79 = scmp.eq.s32.totalorder %s18, 0
      %p80 = por %p78, %p79
      %p81 = scmp.ne.s32.totalorder %s73, %s75
      %p82 = scmp.eq.s32.totalorder %s23, 1
      %p83 = por %p81, %p82
      %p84 = scmp.ne.s32.totalorder %s75, %s76
      %p85 = scmp.eq.s32.totalorder %s23, 0
      %p86 = por %p84, %p85
      %p87 = scmp.ne.s32.totalorder %s75, %s76
      %p88 = scmp.eq.s32.totalorder %s24, 1
      %p89 = por %p87, %p88
      %p91 = scmp.ne.s32.totalorder %s76, %s90
      %p92 = scmp.eq.s32.totalorder %s24, 0
      %p93 = por %p91, %p92
      %s95 = sadd.s32 %s94, 1
      %p98 = scmp.eq.s32.totalorder %s18, 1
      %p99 = scmp.ne.s32.totalorder %s94, %s96
      %p100 = scmp.eq.s32.totalorder %s18, 0
      %p101 = por %p99, %p100
      %p102 = scmp.ne.s32.totalorder %s94, %s96
      %p103 = scmp.eq.s32.totalorder %s23, 1
      %p104 = por %p102, %p103
      %p105 = scmp.ne.s32.totalorder %s96, %s97
      %p106 = scmp.eq.s32.totalorder %s23, 0
      %p107 = por %p105, %p106
      %p108 = scmp.ne.s32.totalorder %s96, %s97
      %p109 = scmp.eq.s32.totalorder %s24, 1
      %p110 = por %p108, %p109
      %p112 = scmp.ne.s32.totalorder %s97, %s111
      %p113 = scmp.eq.s32.totalorder %s24, 0
      %p114 = por %p112, %p113
      %s115 = ssub.s32 %s18, %s25
      %p116 = scmp.eq.s32.totalorder %s115, 0
      %s118 = sadd.s32 %s117, 1
      %s119 = scalar_select %p116, %s117, %s118
      %p122 = pneg %p116
      %p123 = scmp.eq.s32.totalorder %s18, 1
      %p124 = por %p122, %p123
      %p125 = scmp.ne.s32.totalorder %s117, %s120
      %p126 = scmp.eq.s32.totalorder %s18, 0
      %p127 = por %p125, %p126
      %p128 = scmp.ne.s32.totalorder %s117, %s120
      %p129 = scmp.eq.s32.totalorder %s23, 1
      %p130 = por %p128, %p129
      %p131 = scmp.ne.s32.totalorder %s120, %s121
      %p132 = scmp.eq.s32.totalorder %s23, 0
      %p133 = por %p131, %p132
      %p134 = scmp.ne.s32.totalorder %s120, %s121
      %p135 = scmp.eq.s32.totalorder %s24, 1
      %p136 = por %p134, %p135
      %p138 = scmp.ne.s32.totalorder %s121, %s137
      %p139 = scmp.eq.s32.totalorder %s24, 0
      %p140 = por %p138, %p139
      %p141 = scmp.le.s32.totalorder 1, %s18
      %p142 = scmp.lt.s32.totalorder %s18, 3
      %p143 = pnand %p141, %p142
      %p144 = pneg %p143
      // Predicated region
      $region9: #{tpu_custom_call.1} parent=5 // pred_check
        _
      $region10: #{tpu_custom_call.1} parent=5 // pred_check_branch
        %146 = sbr.rel (%p143) target = $region12
      $region11: #{tpu_custom_call.1} parent=5 // pred_region
        %s147 = ssub.s32 %s18, 1
        // Predicated region
        $region13: #{tpu_custom_call.1} parent=11 // pred_check
          %p148 = pneg %p39
        $region14: #{tpu_custom_call.1} parent=11 // pred_check_branch
          %150 = sbr.rel (%p148) target = $region16
        $region15: #{tpu_custom_call.1} parent=11 // pred_region
          _
        $region16: #{tpu_custom_call.1} parent=11 // pred_fallthru
          _
        // Predicated region
        $region17: #{tpu_custom_call.1} parent=11 // pred_check
          %p151 = pneg %p86
        $region18: #{tpu_custom_call.1} parent=11 // pred_check_branch
          %153 = sbr.rel (%p151) target = $region20
        $region19: #{tpu_custom_call.1} parent=11 // pred_region
          %s155 = ssub.s32 512, 512
          %156 = vsyncadd [#allocation7], %s155
          %s157 = sshll.u32 [#allocation6], 4
          %s158 = int_to_ptr.vmem [resolvable:$true] %s157
          %163 = dma.hbm_to_vmem [thread:$0]  %s2, 512, %s158, [#allocation7], 128, 128, 8
        $region20: #{tpu_custom_call.1} parent=11 // pred_fallthru
          _
        // Predicated region
        $region21: #{tpu_custom_call.1} parent=11 // pred_check
          %p164 = pneg %p107
        $region22: #{tpu_custom_call.1} parent=11 // pred_check_branch
          %166 = sbr.rel (%p164) target = $region24
        $region23: #{tpu_custom_call.1} parent=11 // pred_region
          _
        $region24: #{tpu_custom_call.1} parent=11 // pred_fallthru
          _
      $region12: #{tpu_custom_call.1} parent=5 // pred_fallthru
        _
      %p167 = scmp.lt.s32.totalorder %s18, 2
      // Predicated region
      $region25: #{tpu_custom_call.1} parent=5 // pred_check
        %p168 = pneg %p167
      $region26: #{tpu_custom_call.1} parent=5 // pred_check_branch
        %170 = sbr.rel (%p168) target = $region28
      $region27: #{tpu_custom_call.1} parent=5 // pred_region
        // Predicated region
        $region29: #{tpu_custom_call.1} parent=27 // pred_check
          %p171 = pneg %p59
        $region30: #{tpu_custom_call.1} parent=27 // pred_check_branch
          %173 = sbr.rel (%p171) target = $region32
        $region31: #{tpu_custom_call.1} parent=27 // pred_region
          %s174 = sand.u32 %s49, 1
          %s175 = scalar_lea.sflag [#allocation4], %s174
          %s176 = sand.u32 %s49, 1
          %s177 = smul.addr %s176, 8
          %s178 = scalar_lea.vmem [#allocation3], %s177
          %s180 = ssub.s32 128, 128
          %181 = vsyncadd %s175, %s180
          %s182 = smul.addr %s18, 128
          %s183 = scalar_lea.hbm %s1, %s182
          %s185 = sshll.u32 %s178, 4
          %s186 = int_to_ptr.vmem [resolvable:$true] %s185
          %188 = dma.hbm_to_vmem [thread:$0]  %s183, 128, %s186, %s175
        $region32: #{tpu_custom_call.1} parent=27 // pred_fallthru
          _
      $region28: #{tpu_custom_call.1} parent=5 // pred_fallthru
        _
      %p189 = scmp.le.s32.totalorder 1, %s18
      %p190 = scmp.lt.s32.totalorder %s18, 3
      %p191 = pnand %p189, %p190
      %p192 = pneg %p191
      // Predicated region
      $region33: #{tpu_custom_call.1} parent=5 // pred_check
        _
      $region34: #{tpu_custom_call.1} parent=5 // pred_check_branch
        %194 = sbr.rel (%p191) target = $region36
      $region35: #{tpu_custom_call.1} parent=5 // pred_region
        %s195 = ssub.s32 %s18, 1
        %s196 = sand.u32 %s52, 1
        %s197 = scalar_lea.sflag [#allocation4], %s196
        %s198 = sand.u32 %s52, 1
        %s199 = smul.addr %s198, 8
        %s200 = scalar_lea.vmem [#allocation3], %s199
        // Predicated region
        $region37: #{tpu_custom_call.1} parent=35 // pred_check
          %p201 = pneg %p65
        $region38: #{tpu_custom_call.1} parent=35 // pred_check_branch
          %203 = sbr.rel (%p201) target = $region40
        $region39: #{tpu_custom_call.1} parent=35 // pred_region
          %204 = dma.done %s197, 128
        $region40: #{tpu_custom_call.1} parent=35 // pred_fallthru
          _
        // Predicated region
        $region41: #{tpu_custom_call.1} parent=35 // pred_check
          %p205 = pneg %p86
        $region42: #{tpu_custom_call.1} parent=35 // pred_check_branch
          %207 = sbr.rel (%p205) target = $region44
        $region43: #{tpu_custom_call.1} parent=35 // pred_region
          %208 = dma.done [#allocation7], 512
        $region44: #{tpu_custom_call.1} parent=35 // pred_fallthru
          _
        %p209 = pneg %p39
        %p210 = pneg %p36
        %s211 = sand.u32 %s52, 1
        %s212 = scalar_lea.sflag [#allocation4], %s211
        %s213 = sand.u32 %s52, 1
        %s214 = smul.addr %s213, 8
        %s215 = scalar_lea.vmem [#allocation3], %s214
        %p216 = pneg %p65
        %p217 = pneg %p62
        %p218 = pneg %p86
        %p219 = pneg %p83
        %p220 = pneg %p107
        %p221 = pneg %p104
        %p222 = pneg %p133
        %p223 = pneg %p130
        %s224 = sand.u32 %s120, 1
        %s225 = scalar_lea.sflag [#allocation5], %s224
        %s226 = sand.u32 %s120, 1
        %s227 = smul.addr %s226, 8
        %s228 = scalar_lea.vmem [#allocation8], %s227
        %v229 = vld [vmem:[%s200] sm:$0xff]
        %v230 = vld [vmem:[#allocation6] sm:$0xff]
        %v231 = vld [vmem:[#allocation6 + $0x8] sm:$0xff]
        %v232 = vld [vmem:[#allocation6 + $0x10] sm:$0xff]
        %v233 = vld [vmem:[#allocation6 + $0x18] sm:$0xff]
        %v234 = vld [vmem:[%s3] sm:$0x1]
        %v236 = vlaneseq
        %v237 = vshrl.u32 %v236, 7
        %v238 = vsub.s32 0, %v237
        %v239 = vrot.slane %v234, %v238
        %vm241 = vcmask 261120
        %v243 = vsel %vm241, %v229, 0
        %245 = vmatprep.subr.mxu0 0.0
        %246 = vmatpush1.msra.mxu0 0.0
        %247 = vmatprep.subr.mxu0 0.0
        %248 = vmatpush1.msra.mxu0 0.0
        %249 = vmatprep.subr.mxu0 0.0
        %250 = vmatpush1.msra.mxu0 0.0
        %251 = vmatprep.subr.mxu0 0.0
        %252 = vmatpush1.msra.mxu0 0.0
        %253 = vmatprep.subr.mxu0 0.0
        %254 = vmatpush1.msra.mxu0 0.0
        %255 = vmatprep.subr.mxu0 0.0
        %256 = vmatpush1.msra.mxu0 0.0
        %257 = vmatprep.subr.mxu0 0.0
        %258 = vmatpush1.msra.mxu0 0.0
        %259 = vmatprep.subr.mxu0 0.0
        %260 = vmatpush1.msra.mxu0 0.0
        %261 = vmatprep.subr.mxu0 0.0
        %262 = vmatpush1.msra.mxu0 0.0
        %263 = vmatprep.subr.mxu0 0.0
        %264 = vmatpush1.msra.mxu0 0.0
        %265 = vmatprep.subr.mxu0 0.0
        %266 = vmatpush1.msra.mxu0 0.0
        %267 = vmatprep.subr.mxu0 0.0
        %268 = vmatpush1.msra.mxu0 0.0
        %269 = vmatprep.subr.mxu0 0.0
        %270 = vmatpush1.msra.mxu0 %v233
        %271 = vmatprep.subr.mxu0 0.0
        %272 = vmatpush1.msra.mxu0 %v232
        %273 = vmatprep.subr.mxu0 0.0
        %274 = vmatpush1.msra.mxu0 %v231
        %275 = vmatprep.subr.mxu0 0.0
        %276 = vmatpush1.msra.mxu0 %v230
        %277 = vmatprep.subr.mxu0 0.0
        %278 = vmatpush2.msra.mxu0 0.0
        %279 = vmatprep.subr.mxu0 0.0
        %280 = vmatpush2.msra.mxu0 0.0
        %281 = vmatprep.subr.mxu0 0.0
        %282 = vmatpush2.msra.mxu0 0.0
        %283 = vmatprep.subr.mxu0 0.0
        %284 = vmatpush2.msra.mxu0 0.0
        %285 = vmatprep.subr.mxu0 0.0
        %286 = vmatpush2.msra.mxu0 0.0
        %287 = vmatprep.subr.mxu0 0.0
        %288 = vmatpush2.msra.mxu0 0.0
        %289 = vmatprep.subr.mxu0 0.0
        %290 = vmatpush2.msra.mxu0 0.0
        %291 = vmatprep.subr.mxu0 0.0
        %292 = vmatpush2.msra.mxu0 0.0
        %293 = vmatprep.subr.mxu0 0.0
        %294 = vmatpush2.msra.mxu0 0.0
        %295 = vmatprep.subr.mxu0 0.0
        %296 = vmatpush2.msra.mxu0 0.0
        %297 = vmatprep.subr.mxu0 0.0
        %298 = vmatpush2.msra.mxu0 0.0
        %299 = vmatprep.subr.mxu0 0.0
        %300 = vmatpush2.msra.mxu0 0.0
        %301 = vmatprep.subr.mxu0 0.0
        %302 = vmatpush2.msra.mxu0 0.0
        %303 = vmatprep.subr.mxu0 0.0
        %304 = vmatpush2.msra.mxu0 0.0
        %305 = vmatprep.subr.mxu0 0.0
        %306 = vmatpush2.msra.mxu0 0.0
        %307 = vmatprep.subr.mxu0 0.0
        %308 = vmatpush2.msra.mxu0 0.0
        %309 = vmatprep.mubr.f32.mxu0 0.0
        %310 = vmatmul.mubr.f32.gmra.mxu0 %v243
        %v311 = vpop.f32.mrf.mxu0
        %v312 = vadd.f32 %v239, %v311
        %v313 = vpop.f32.mrf.mxu0
        %314 = vdwg.mxu0
        %s315 = sld [smem:[#allocation2]]
        %v316 = vxor.u32 %v312, 2147483648
        %v317 = vmul.f32 %v316, 1.442695
        %v318 = vpow.pop %v317
        %v319 = vadd.f32 %v318, 1.0
        %v320 = vrcp.pop %v319
        %v321 = vmul.f32 1.0, %v320
        %v322 = vstv %s315
        %v323 = vmul.f32 %v322, 1.442695
        %v324 = vpow.pop %v323
        %s325 = vtos %v324
        %v326 = vstv %s325
        %v327 = vmul.f32 %v321, %v326
        %v328 = vadd.f32 %v327, 1.1
        %v329 = vmul.f32 %v312, %v312
        %330 = vadd.xlane.f32.xlu0 %v329
        %v331 = vpop.xlane.xlu0 %330
        %v332 = vsub.f32 %v331, %v329
        %v333 = vmax.f32 %v332, 0.0
        %v334 = vadd.f32 %v333, 1e-09
        %v335 = vmul.f32 %v328, %v328
        %v336 = vsub.f32 %v335, 1.0
        %v337 = vrcp.pop %v334
        %v338 = vmul.f32 %v336, %v337
        %v339 = vrsqrt.pop %v338
        %v340 = vmul.f32 %v338, %v339
        %vm341 = vcmp.eq.f32.partialorder %v338, inf
        %v342 = vsel %vm341, %v338, %v340
        %vm343 = vcmp.eq.f32.partialorder %v338, 0.0
        %v344 = vand.u32 %v338, 2147483648
        %v345 = vsel %vm343, %v344, %v342
        %v346 = vlaneseq
        %v347 = vand.u32 %v346, 127
        %vm348 = vcmp.eq.s32.totalorder %v347, 0
        %350 = vset.pattern.permute.xlu0 0
        %351 = vperm.xlu0 %350, %v345
        %v352 = vpop.permute.xlu0 %351
        %v354 = vmul.f32 %v312, %v352
        %356 = vset.pattern.permute.xlu0 0
        %357 = vperm.xlu0 %356, %v328
        %v358 = vpop.permute.xlu0 %357
        %v360 = vsel %vm348, %v358, %v354
        %361 = vst [vmem:[%s228] sm:$0xff] %v360
        %s362 = sand.u32 %s120, 1
        %s363 = scalar_lea.sflag [#allocation5], %s362
        %s364 = sand.u32 %s120, 1
        %s365 = smul.addr %s364, 8
        %s366 = scalar_lea.vmem [#allocation8], %s365
        // Predicated region
        $region45: #{tpu_custom_call.1} parent=35 // pred_check
          %p367 = pneg %p130
        $region46: #{tpu_custom_call.1} parent=35 // pred_check_branch
          %369 = sbr.rel (%p367) target = $region48
        $region47: #{tpu_custom_call.1} parent=35 // pred_region
          %s371 = ssub.s32 128, 128
          %372 = vsyncadd %s363, %s371
          %s373 = smul.addr %s23, 128
          %s374 = scalar_lea.hbm %s4, %s373
          %s376 = sshll.u32 %s366, 4
          %s377 = int_to_ptr.vmem [resolvable:$true] %s376
          %379 = dma.vmem_to_hbm [thread:$0]  %s377, 128, %s374, %s363
        $region48: #{tpu_custom_call.1} parent=35 // pred_fallthru
          _
      $region36: #{tpu_custom_call.1} parent=5 // pred_fallthru
        _
      %p380 = scmp.le.s32.totalorder 2, %s18
      // Predicated region
      $region49: #{tpu_custom_call.1} parent=5 // pred_check
        %p381 = pneg %p380
      $region50: #{tpu_custom_call.1} parent=5 // pred_check_branch
        %383 = sbr.rel (%p381) target = $region52
      $region51: #{tpu_custom_call.1} parent=5 // pred_region
        %s384 = ssub.s32 %s18, 2
        // Predicated region
        $region53: #{tpu_custom_call.1} parent=51 // pred_check
          %p385 = pneg %p136
        $region54: #{tpu_custom_call.1} parent=51 // pred_check_branch
          %387 = sbr.rel (%p385) target = $region56
        $region55: #{tpu_custom_call.1} parent=51 // pred_region
          %s388 = sand.u32 %s121, 1
          %s389 = scalar_lea.sflag [#allocation5], %s388
          %s390 = sand.u32 %s121, 1
          %s391 = smul.addr %s390, 8
          %s392 = scalar_lea.vmem [#allocation8], %s391
          %393 = dma.done %s389, 128
        $region56: #{tpu_custom_call.1} parent=51 // pred_fallthru
          _
      $region52: #{tpu_custom_call.1} parent=5 // pred_fallthru
        _
    $region6: #{tpu_custom_call.1} parent=1 // loop_footer
      %s22 = sadd.s32 1, %s18
    $region7: #{tpu_custom_call.1} parent=1 // loop_footer_branch
      %17 = sbr.rel target = $region3
    $region8: #{tpu_custom_call.1} parent=1 // loop_exit
      _
    %394 = vsyncpa [#allocation4], 1
    %s395 = scalar_lea.sflag [#allocation4], 1
    %396 = vsyncpa %s395, 1
    %397 = vsyncpa [#allocation7], 1
    %398 = vsyncpa [#allocation5], 1
    %s399 = scalar_lea.sflag [#allocation5], 1
    %400 = vsyncpa %s399, 1

</llo_original>
